<compile_context>
chip_gen: v5e
topology: v5e:2x2
jax: 0.10.0
libtpu: 0.0.40
codegen_flags: <defaults>
</compile_context>

<pallas_src>
import jax
import jax.numpy as jnp
import numpy as np
from jax.experimental import pallas as pl
from jax.experimental.pallas import tpu as pltpu


# ---------------------------------------------------------------------------
# Kernel 1: XW1 = (X @ W1) cast to bf16 (hoisted out of the main kernel).
# ---------------------------------------------------------------------------
def xw1_kernel(x_ref, w1_ref, xw1_ref):
    xw1 = jnp.dot(x_ref[...], w1_ref[...], preferred_element_type=jnp.float32)
    xw1_ref[...] = xw1.astype(jnp.bfloat16)


# ---------------------------------------------------------------------------
# Kernel 2: streamed aggregation with folded (un-normalized) mean pooling.
#   per node-row tile t:  h1 = relu(A[t] @ XW1) ;  g = h1 @ W2 ;
#                         partial[core] += PA[:, t] @ g
# Grid = (num_cores ["parallel"], tiles_per_core ["arbitrary" reduction]).
# ---------------------------------------------------------------------------
def agg_kernel(a_ref, pa_ref, xw1_ref, w2_ref, out_ref):
    i = pl.program_id(1)

    @pl.when(i == 0)
    def _init():
        out_ref[...] = jnp.zeros_like(out_ref)

    # conv1 for this node-row tile: relu(A_tile @ (X @ W1))   [TM, DIM_PAD]
    h1 = jnp.dot(a_ref[...], xw1_ref[...], preferred_element_type=jnp.float32)
    h1 = jnp.maximum(h1, 0.0).astype(jnp.bfloat16)       # relu in f32, feed MXU bf16
    # conv2 dense transform (aggregation folded into PA below): H1 @ W2
    g = jnp.dot(h1, w2_ref[...], preferred_element_type=jnp.float32)
    # folded pooling + conv2 aggregation: partial[g, d] += sum_n PA[g, n] * g[n, d]
    out_ref[...] += jnp.dot(pa_ref[...], g.astype(jnp.bfloat16),
                            preferred_element_type=jnp.float32)


# ---------------------------------------------------------------------------
# Kernel 3: combine per-core partials, apply 1/count mean, FC, tanh.
# ---------------------------------------------------------------------------
def finalize_kernel(part_ref, inv_ref, wfc_ref, out_ref):
    g_pad = inv_ref.shape[0]
    num_cores = part_ref.shape[0] // g_pad
    pooled = part_ref[0:g_pad, :]
    for c in range(1, num_cores):
        pooled = pooled + part_ref[c * g_pad:(c + 1) * g_pad, :]
    pooled = pooled * inv_ref[...]                       # per-graph mean (exact scaling)
    out = jnp.dot(pooled, wfc_ref[...], preferred_element_type=jnp.float32)
    out_ref[...] = jnp.tanh(out)


def netgcn_forward(x_p, adj_b, pa_b, inv_p, w1_p, w2_b, wfc_p, *,
                   num_graphs, output_size, row_tile, num_cores):
    n_pad, _ = x_p.shape
    dim_pad = w1_p.shape[1]
    g_pad = pa_b.shape[0]
    out_pad = wfc_p.shape[1]
    tiles_per_core = n_pad // (row_tile * num_cores)
    assert tiles_per_core * row_tile * num_cores == n_pad

    # 1) X @ W1 -> bf16 (tiny full-block call, keeps the main pipeline prologue clean).
    xw1 = pl.pallas_call(
        xw1_kernel,
        out_shape=jax.ShapeDtypeStruct((n_pad, dim_pad), jnp.bfloat16),
    )(x_p, w1_p)

    # 2) streamed O(N^2) aggregation producing per-core partial pooled sums.
    partials = pl.pallas_call(
        agg_kernel,
        out_shape=jax.ShapeDtypeStruct((num_cores * g_pad, dim_pad), jnp.float32),
        grid_spec=pltpu.PrefetchScalarGridSpec(
            num_scalar_prefetch=0,
            grid=(num_cores, tiles_per_core),
            in_specs=[
                # A row tiles (bf16), streamed & double-buffered
                pl.BlockSpec((row_tile, n_pad),
                             lambda c, i: (c * tiles_per_core + i, 0)),
                # un-normalized pooling tiles, lane-dense (G_PAD, ROW_TILE), bf16
                pl.BlockSpec((g_pad, row_tile),
                             lambda c, i: (0, c * tiles_per_core + i)),
                # XW1 resident (constant block index -> fetched once)
                pl.BlockSpec((n_pad, dim_pad), lambda c, i: (0, 0)),
                # W2 resident (bf16)
                pl.BlockSpec((dim_pad, dim_pad), lambda c, i: (0, 0)),
            ],
            out_specs=pl.BlockSpec((g_pad, dim_pad), lambda c, i: (c, 0)),
        ),
        compiler_params=pltpu.CompilerParams(
            dimension_semantics=("parallel", "arbitrary"),
            vmem_limit_bytes=48 * 1024 * 1024,
        ),
    )(adj_b, pa_b, xw1, w2_b)

    # 3) combine partials + mean + fc + tanh (tiny, one-off).
    out_padded = pl.pallas_call(
        finalize_kernel,
        out_shape=jax.ShapeDtypeStruct((g_pad, out_pad), jnp.float32),
    )(partials, inv_p, wfc_p)

    return out_padded[:num_graphs, :output_size]


def reference_forward(x, edge_index, batch, w1, w2, wfc, num_graphs):
    src, dst = edge_index[0], edge_index[1]
    # conv1 (sum aggregation, normalize=False, no bias)
    h = x @ w1
    h = jnp.zeros_like(h).at[dst].add(h[src])
    h = jnp.maximum(h, 0.0)
    # conv2
    h = h @ w2
    h = jnp.zeros_like(h).at[dst].add(h[src])
    # global mean pool
    sums = jnp.zeros((num_graphs, h.shape[1]), h.dtype).at[batch].add(h)
    counts = jnp.zeros((num_graphs,), h.dtype).at[batch].add(1.0)
    pooled = sums / jnp.maximum(counts, 1.0)[:, None]
    return jnp.tanh(pooled @ wfc)


if __name__ == "__main__":
    # Small synthetic problem consistent with the module's forward.
    num_nodes = 512       # N (sized so the row tiling / core split are exercised)
    num_features = 16     # num_features
    dim = 10              # hidden dim (module default)
    output_size = 4       # output_size
    num_graphs = 2        # graphs in the batch
    num_edges = 1024

    DIM_PAD = 128         # hidden dim padded to a full lane width (exact zero pad)
    OUT_PAD = 128         # lane-dense output store
    G_PAD = 8             # graph count padded to a full sublane
    ROW_TILE = 128        # node-row tile (>= v5e MXU M); raise to 256+ at real sizes
    NUM_CORES = 2         # leading "parallel" grid axis (second TC on v7x)

    key = jax.random.PRNGKey(0)
    kx, ke1, ke2, kw1, kw2, kwf = jax.random.split(key, 6)

    x = jax.random.normal(kx, (num_nodes, num_features), dtype=jnp.float32)
    src = jax.random.randint(ke1, (num_edges,), 0, num_nodes)
    dst = jax.random.randint(ke2, (num_edges,), 0, num_nodes)
    edge_index = jnp.stack([src, dst], axis=0)                       # [2, E]
    batch = (jnp.arange(num_nodes) * num_graphs // num_nodes).astype(jnp.int32)

    # Parameters (PyTorch Linear weight is (out, in); pass transposed (in, out)).
    w1 = jax.random.normal(kw1, (num_features, dim), dtype=jnp.float32) * 0.1
    w2 = jax.random.normal(kw2, (dim, dim), dtype=jnp.float32) * 0.1
    wfc = jax.random.normal(kwf, (dim, output_size), dtype=jnp.float32) * 0.1

    # Node dim padded to a multiple of ROW_TILE*NUM_CORES (also a multiple of 128,
    # so the aggregation matmul's K is lane-dense).
    tile_span = ROW_TILE * NUM_CORES
    n_pad = ((num_nodes + tile_span - 1) // tile_span) * tile_span

    # Dense adjacency A[dst, src] = edge multiplicity (sum aggregation, normalize=False).
    # Small-integer multiplicities (< 256) are exact in bf16.
    adj = jnp.zeros((num_nodes, num_nodes), jnp.float32).at[dst, src].add(1.0)
    adj_p = jnp.zeros((n_pad, n_pad), jnp.float32).at[:num_nodes, :num_nodes].set(adj)
    adj_b = adj_p.astype(jnp.bfloat16)

    # Un-normalized pooling fold: PA[g, n] = sum_d [batch[d]==g] * A[d, n]  (integer counts,
    # exact in bf16); the 1/count scaling is applied in the finalize kernel.
    onehot = (batch[None, :] == jnp.arange(num_graphs)[:, None]).astype(jnp.float32)
    pa = onehot @ adj                                                # [G, N] integers
    pa_p = jnp.zeros((G_PAD, n_pad), jnp.float32).at[:num_graphs, :num_nodes].set(pa)
    pa_b = pa_p.astype(jnp.bfloat16)

    counts = jnp.maximum(onehot.sum(axis=1), 1.0)
    inv_p = jnp.ones((G_PAD, 1), jnp.float32).at[:num_graphs, 0].set(1.0 / counts)

    # Zero-padded node features and lane-dense weights (padding is exact).
    x_p = jnp.zeros((n_pad, num_features), jnp.float32).at[:num_nodes].set(x)
    w1_p = jnp.zeros((num_features, DIM_PAD), jnp.float32).at[:, :dim].set(w1)
    w2_p = jnp.zeros((DIM_PAD, DIM_PAD), jnp.float32).at[:dim, :dim].set(w2)
    w2_b = w2_p.astype(jnp.bfloat16)
    wfc_p = jnp.zeros((DIM_PAD, OUT_PAD), jnp.float32).at[:dim, :output_size].set(wfc)

    out = netgcn_forward(x_p, adj_b, pa_b, inv_p, w1_p, w2_b, wfc_p,
                         num_graphs=num_graphs, output_size=output_size,
                         row_tile=ROW_TILE, num_cores=NUM_CORES)
    out = jax.block_until_ready(out)

    ref = reference_forward(x, edge_index, batch, w1, w2, wfc, num_graphs)
    ref = jax.block_until_ready(ref)

    # Tolerance reflects the bf16 MXU inputs on the XW1 / H1 / W2 / G path
    # (A and PA are integer-valued and exact in bf16; all accumulation is f32).
    np.testing.assert_allclose(np.asarray(out), np.asarray(ref), rtol=5e-3, atol=2e-3)
    print("KERNEL_OK")
</pallas_src>

<mosaic_0001>
module attributes {stable_mosaic.version = 11 : i64} {
  func.func @xw1_kernel(%arg0: memref<512x16xf32, #tpu.memory_space<vmem>>, %arg1: memref<16x128xf32, #tpu.memory_space<vmem>>, %arg2: memref<512x128xbf16, #tpu.memory_space<vmem>>) attributes {dimension_semantics = [], scalar_prefetch = 0 : i64, scratch_operands = 0 : i64, tpu.core_type = #tpu.core_type<tc>} {
    %c0 = arith.constant 0 : index
    %c0_0 = arith.constant 0 : index
    %0 = vector.load %arg0[%c0, %c0_0] : memref<512x16xf32, #tpu.memory_space<vmem>>, vector<512x16xf32>
    %c0_1 = arith.constant 0 : index
    %c0_2 = arith.constant 0 : index
    %1 = vector.load %arg1[%c0_1, %c0_2] : memref<16x128xf32, #tpu.memory_space<vmem>>, vector<16x128xf32>
    %cst = arith.constant dense<0.000000e+00> : vector<512x128xf32>
    %2 = tpu.matmul %0, %1, %cst {dimension_numbers = #tpu.dot_dimension_numbers<[1], [0], [0], [1], [0, 0, 1, 1], [], []>} : vector<512x16xf32>, vector<16x128xf32>, vector<512x128xf32> -> vector<512x128xf32>
    %3 = arith.truncf %2 : vector<512x128xf32> to vector<512x128xbf16>
    %c0_3 = arith.constant 0 : index
    %c0_4 = arith.constant 0 : index
    %4 = vector.load %arg2[%c0_3, %c0_4] : memref<512x128xbf16, #tpu.memory_space<vmem>>, vector<512x128xbf16>
    tpu.vector_store %arg2[%c0_3, %c0_4], %3 {strides = array<i32>} : memref<512x128xbf16, #tpu.memory_space<vmem>>, vector<512x128xbf16>,
    return
  }
}

</mosaic_0001>

<llo_original>
// kernel: tpu_custom_call.1
$region0: #{tpu_custom_call.1}
  #allocation0 [shape = 'u32[]', space=smem, size = 0x4, offset = 0x4, fixed_abs, tag = 'smem constant byte address 0x4 - core index']
  #allocation1 [shape = 'u32[72,128]{1,0:T(1,128)}', space=vmem, size = 0x9000, scoped, tag = 'internal scratch']
  %s0 = inlined_call_operand.vmem [shape: f32[512,16], index: 0, kind: input, shape index: {}]
  %s1 = inlined_call_operand.vmem [shape: f32[16,128], index: 1, kind: input, shape index: {}]
  %s2 = inlined_call_operand.hbm [shape: bf16[512,128], index: 2, kind: output, shape index: {}]
  %s3 = sld [smem:[#allocation0]]
  $region18: #{tpu_custom_call.1} parent=0
    _
  %s5 = ssub.s32 1, %s3
  %s6 = scalar_select 0, %s5, %s3
  $region1: #{tpu_custom_call.1} parent=0
    #allocation2 [shape = 'u8[131072]{0}', space=vmem, size = 0x20000, scoped, tag = 'output window, operand 0, single buffered']
    #allocation3 [shape = 's32[1]{0}', space=sflag, size = 0x4, scoped, tag = 'scoped memory for tpu_custom_call.1']
    %7 = vsyncpa [#allocation3], 0
    // Predicated region
    $region2: #{tpu_custom_call.1} parent=1 // pred_check
      _
    $region3: #{tpu_custom_call.1} parent=1 // pred_check_branch
      %9 = sbr.rel (0) target = $region5
    $region4: #{tpu_custom_call.1} parent=1 // pred_region
      _
    $region5: #{tpu_custom_call.1} parent=1 // pred_fallthru
      _
    // Predicated region
    $region6: #{tpu_custom_call.1} parent=1 // pred_check
      _
    $region7: #{tpu_custom_call.1} parent=1 // pred_check_branch
      %11 = sbr.rel (0) target = $region9
    $region8: #{tpu_custom_call.1} parent=1 // pred_region
      _
    $region9: #{tpu_custom_call.1} parent=1 // pred_fallthru
      _
    %v12 = vld [vmem:[%s0] sm:$0xff]
    %v13 = vld [vmem:[%s0 + $0x8] sm:$0xff]
    %v14 = vld [vmem:[%s0 + $0x10] sm:$0xff]
    %v15 = vld [vmem:[%s0 + $0x18] sm:$0xff]
    %v16 = vld [vmem:[%s0 + $0x20] sm:$0xff]
    %v17 = vld [vmem:[%s0 + $0x28] sm:$0xff]
    %v18 = vld [vmem:[%s0 + $0x30] sm:$0xff]
    %v19 = vld [vmem:[%s0 + $0x38] sm:$0xff]
    %v20 = vld [vmem:[%s0 + $0x40] sm:$0xff]
    %v21 = vld [vmem:[%s0 + $0x48] sm:$0xff]
    %v22 = vld [vmem:[%s0 + $0x50] sm:$0xff]
    %v23 = vld [vmem:[%s0 + $0x58] sm:$0xff]
    %v24 = vld [vmem:[%s0 + $0x60] sm:$0xff]
    %v25 = vld [vmem:[%s0 + $0x68] sm:$0xff]
    %v26 = vld [vmem:[%s0 + $0x70] sm:$0xff]
    %v27 = vld [vmem:[%s0 + $0x78] sm:$0xff]
    %v28 = vld [vmem:[%s0 + $0x80] sm:$0xff]
    %v29 = vld [vmem:[%s0 + $0x88] sm:$0xff]
    %v30 = vld [vmem:[%s0 + $0x90] sm:$0xff]
    %v31 = vld [vmem:[%s0 + $0x98] sm:$0xff]
    %v32 = vld [vmem:[%s0 + $0xa0] sm:$0xff]
    %v33 = vld [vmem:[%s0 + $0xa8] sm:$0xff]
    %v34 = vld [vmem:[%s0 + $0xb0] sm:$0xff]
    %v35 = vld [vmem:[%s0 + $0xb8] sm:$0xff]
    %v36 = vld [vmem:[%s0 + $0xc0] sm:$0xff]
    %v37 = vld [vmem:[%s0 + $0xc8] sm:$0xff]
    %v38 = vld [vmem:[%s0 + $0xd0] sm:$0xff]
    %v39 = vld [vmem:[%s0 + $0xd8] sm:$0xff]
    %v40 = vld [vmem:[%s0 + $0xe0] sm:$0xff]
    %v41 = vld [vmem:[%s0 + $0xe8] sm:$0xff]
    %v42 = vld [vmem:[%s0 + $0xf0] sm:$0xff]
    %v43 = vld [vmem:[%s0 + $0xf8] sm:$0xff]
    %v44 = vld [vmem:[%s0 + $0x100] sm:$0xff]
    %v45 = vld [vmem:[%s0 + $0x108] sm:$0xff]
    %v46 = vld [vmem:[%s0 + $0x110] sm:$0xff]
    %v47 = vld [vmem:[%s0 + $0x118] sm:$0xff]
    %v48 = vld [vmem:[%s0 + $0x120] sm:$0xff]
    %v49 = vld [vmem:[%s0 + $0x128] sm:$0xff]
    %v50 = vld [vmem:[%s0 + $0x130] sm:$0xff]
    %v51 = vld [vmem:[%s0 + $0x138] sm:$0xff]
    %v52 = vld [vmem:[%s0 + $0x140] sm:$0xff]
    %v53 = vld [vmem:[%s0 + $0x148] sm:$0xff]
    %v54 = vld [vmem:[%s0 + $0x150] sm:$0xff]
    %v55 = vld [vmem:[%s0 + $0x158] sm:$0xff]
    %v56 = vld [vmem:[%s0 + $0x160] sm:$0xff]
    %v57 = vld [vmem:[%s0 + $0x168] sm:$0xff]
    %v58 = vld [vmem:[%s0 + $0x170] sm:$0xff]
    %v59 = vld [vmem:[%s0 + $0x178] sm:$0xff]
    %v60 = vld [vmem:[%s0 + $0x180] sm:$0xff]
    %v61 = vld [vmem:[%s0 + $0x188] sm:$0xff]
    %v62 = vld [vmem:[%s0 + $0x190] sm:$0xff]
    %v63 = vld [vmem:[%s0 + $0x198] sm:$0xff]
    %v64 = vld [vmem:[%s0 + $0x1a0] sm:$0xff]
    %v65 = vld [vmem:[%s0 + $0x1a8] sm:$0xff]
    %v66 = vld [vmem:[%s0 + $0x1b0] sm:$0xff]
    %v67 = vld [vmem:[%s0 + $0x1b8] sm:$0xff]
    %v68 = vld [vmem:[%s0 + $0x1c0] sm:$0xff]
    %v69 = vld [vmem:[%s0 + $0x1c8] sm:$0xff]
    %v70 = vld [vmem:[%s0 + $0x1d0] sm:$0xff]
    %v71 = vld [vmem:[%s0 + $0x1d8] sm:$0xff]
    %v72 = vld [vmem:[%s0 + $0x1e0] sm:$0xff]
    %v73 = vld [vmem:[%s0 + $0x1e8] sm:$0xff]
    %v74 = vld [vmem:[%s0 + $0x1f0] sm:$0xff]
    %v75 = vld [vmem:[%s0 + $0x1f8] sm:$0xff]
    %v76 = vld [vmem:[%s1] sm:$0xff]
    %v77 = vld [vmem:[%s1 + $0x8] sm:$0xff]
    %vm78 = vcmask 130048
    %v80 = vsel %vm78, %v12, 0
    %v83 = vsel %vm78, %v13, 0
    %v86 = vsel %vm78, %v14, 0
    %v89 = vsel %vm78, %v15, 0
    %v92 = vsel %vm78, %v16, 0
    %v95 = vsel %vm78, %v17, 0
    %v98 = vsel %vm78, %v18, 0
    %v101 = vsel %vm78, %v19, 0
    %v104 = vsel %vm78, %v20, 0
    %v107 = vsel %vm78, %v21, 0
    %v110 = vsel %vm78, %v22, 0
    %v113 = vsel %vm78, %v23, 0
    %v116 = vsel %vm78, %v24, 0
    %v119 = vsel %vm78, %v25, 0
    %v122 = vsel %vm78, %v26, 0
    %v125 = vsel %vm78, %v27, 0
    %v128 = vsel %vm78, %v28, 0
    %v131 = vsel %vm78, %v29, 0
    %v134 = vsel %vm78, %v30, 0
    %v137 = vsel %vm78, %v31, 0
    %v140 = vsel %vm78, %v32, 0
    %v143 = vsel %vm78, %v33, 0
    %v146 = vsel %vm78, %v34, 0
    %v149 = vsel %vm78, %v35, 0
    %v152 = vsel %vm78, %v36, 0
    %v155 = vsel %vm78, %v37, 0
    %v158 = vsel %vm78, %v38, 0
    %v161 = vsel %vm78, %v39, 0
    %v164 = vsel %vm78, %v40, 0
    %v167 = vsel %vm78, %v41, 0
    %v170 = vsel %vm78, %v42, 0
    %v173 = vsel %vm78, %v43, 0
    %v176 = vsel %vm78, %v44, 0
    %v179 = vsel %vm78, %v45, 0
    %v182 = vsel %vm78, %v46, 0
    %v185 = vsel %vm78, %v47, 0
    %v188 = vsel %vm78, %v48, 0
    %v191 = vsel %vm78, %v49, 0
    %v194 = vsel %vm78, %v50, 0
    %v197 = vsel %vm78, %v51, 0
    %v200 = vsel %vm78, %v52, 0
    %v203 = vsel %vm78, %v53, 0
    %v206 = vsel %vm78, %v54, 0
    %v209 = vsel %vm78, %v55, 0
    %v212 = vsel %vm78, %v56, 0
    %v215 = vsel %vm78, %v57, 0
    %v218 = vsel %vm78, %v58, 0
    %v221 = vsel %vm78, %v59, 0
    %v224 = vsel %vm78, %v60, 0
    %v227 = vsel %vm78, %v61, 0
    %v230 = vsel %vm78, %v62, 0
    %v233 = vsel %vm78, %v63, 0
    %v236 = vsel %vm78, %v64, 0
    %v239 = vsel %vm78, %v65, 0
    %v242 = vsel %vm78, %v66, 0
    %v245 = vsel %vm78, %v67, 0
    %v248 = vsel %vm78, %v68, 0
    %v251 = vsel %vm78, %v69, 0
    %v254 = vsel %vm78, %v70, 0
    %v257 = vsel %vm78, %v71, 0
    %v260 = vsel %vm78, %v72, 0
    %v263 = vsel %vm78, %v73, 0
    %v266 = vsel %vm78, %v74, 0
    %v269 = vsel %vm78, %v75, 0
    %271 = vmatpush.msra.mxu0 0.0
    %272 = vmatpush.msra.mxu0 0.0
    %273 = vmatpush.msra.mxu0 0.0
    %274 = vmatpush.msra.mxu0 0.0
    %275 = vmatpush.msra.mxu0 0.0
    %276 = vmatpush.msra.mxu0 0.0
    %277 = vmatpush.msra.mxu0 0.0
    %278 = vmatpush.msra.mxu0 0.0
    %279 = vmatpush.msra.mxu0 0.0
    %280 = vmatpush.msra.mxu0 0.0
    %281 = vmatpush.msra.mxu0 0.0
    %282 = vmatpush.msra.mxu0 0.0
    %283 = vmatpush.msra.mxu0 0.0
    %284 = vmatpush.msra.mxu0 0.0
    %285 = vmatpush.msra.mxu0 %v77
    %286 = vmatpush.msra.mxu0 %v76
    %287 = vmatmul.f32.gmra.mxu0 %v80
    %v288 = vpop.f32.mrf.mxu0
    %v289 = vadd.f32 0.0, %v288
    %290 = vmatmul.f32.gmra.mxu0 %v83
    %v291 = vpop.f32.mrf.mxu0
    %v292 = vadd.f32 0.0, %v291
    %293 = vmatmul.f32.gmra.mxu0 %v86
    %v294 = vpop.f32.mrf.mxu0
    %v295 = vadd.f32 0.0, %v294
    %296 = vmatmul.f32.gmra.mxu0 %v89
    %v297 = vpop.f32.mrf.mxu0
    %v298 = vadd.f32 0.0, %v297
    %299 = vmatmul.f32.gmra.mxu0 %v92
    %v300 = vpop.f32.mrf.mxu0
    %v301 = vadd.f32 0.0, %v300
    %302 = vmatmul.f32.gmra.mxu0 %v95
    %v303 = vpop.f32.mrf.mxu0
    %v304 = vadd.f32 0.0, %v303
    %305 = vmatmul.f32.gmra.mxu0 %v98
    %v306 = vpop.f32.mrf.mxu0
    %v307 = vadd.f32 0.0, %v306
    %308 = vmatmul.f32.gmra.mxu0 %v101
    %v309 = vpop.f32.mrf.mxu0
    %v310 = vadd.f32 0.0, %v309
    %311 = vmatmul.f32.gmra.mxu0 %v104
    %v312 = vpop.f32.mrf.mxu0
    %v313 = vadd.f32 0.0, %v312
    %314 = vmatmul.f32.gmra.mxu0 %v107
    %v315 = vpop.f32.mrf.mxu0
    %v316 = vadd.f32 0.0, %v315
    %317 = vmatmul.f32.gmra.mxu0 %v110
    %v318 = vpop.f32.mrf.mxu0
    %v319 = vadd.f32 0.0, %v318
    %320 = vmatmul.f32.gmra.mxu0 %v113
    %v321 = vpop.f32.mrf.mxu0
    %v322 = vadd.f32 0.0, %v321
    %323 = vmatmul.f32.gmra.mxu0 %v116
    %v324 = vpop.f32.mrf.mxu0
    %v325 = vadd.f32 0.0, %v324
    %326 = vmatmul.f32.gmra.mxu0 %v119
    %v327 = vpop.f32.mrf.mxu0
    %v328 = vadd.f32 0.0, %v327
    %329 = vmatmul.f32.gmra.mxu0 %v122
    %v330 = vpop.f32.mrf.mxu0
    %v331 = vadd.f32 0.0, %v330
    %332 = vmatmul.f32.gmra.mxu0 %v125
    %v333 = vpop.f32.mrf.mxu0
    %v334 = vadd.f32 0.0, %v333
    %335 = vmatmul.f32.gmra.mxu0 %v128
    %v336 = vpop.f32.mrf.mxu0
    %v337 = vadd.f32 0.0, %v336
    %338 = vmatmul.f32.gmra.mxu0 %v131
    %v339 = vpop.f32.mrf.mxu0
    %v340 = vadd.f32 0.0, %v339
    %341 = vmatmul.f32.gmra.mxu0 %v134
    %v342 = vpop.f32.mrf.mxu0
    %v343 = vadd.f32 0.0, %v342
    %344 = vmatmul.f32.gmra.mxu0 %v137
    %v345 = vpop.f32.mrf.mxu0
    %v346 = vadd.f32 0.0, %v345
    %347 = vmatmul.f32.gmra.mxu0 %v140
    %v348 = vpop.f32.mrf.mxu0
    %v349 = vadd.f32 0.0, %v348
    %350 = vmatmul.f32.gmra.mxu0 %v143
    %v351 = vpop.f32.mrf.mxu0
    %v352 = vadd.f32 0.0, %v351
    %353 = vmatmul.f32.gmra.mxu0 %v146
    %v354 = vpop.f32.mrf.mxu0
    %v355 = vadd.f32 0.0, %v354
    %356 = vmatmul.f32.gmra.mxu0 %v149
    %v357 = vpop.f32.mrf.mxu0
    %v358 = vadd.f32 0.0, %v357
    %359 = vmatmul.f32.gmra.mxu0 %v152
    %v360 = vpop.f32.mrf.mxu0
    %v361 = vadd.f32 0.0, %v360
    %362 = vmatmul.f32.gmra.mxu0 %v155
    %v363 = vpop.f32.mrf.mxu0
    %v364 = vadd.f32 0.0, %v363
    %365 = vmatmul.f32.gmra.mxu0 %v158
    %v366 = vpop.f32.mrf.mxu0
    %v367 = vadd.f32 0.0, %v366
    %368 = vmatmul.f32.gmra.mxu0 %v161
    %v369 = vpop.f32.mrf.mxu0
    %v370 = vadd.f32 0.0, %v369
    %371 = vmatmul.f32.gmra.mxu0 %v164
    %v372 = vpop.f32.mrf.mxu0
    %v373 = vadd.f32 0.0, %v372
    %374 = vmatmul.f32.gmra.mxu0 %v167
    %v375 = vpop.f32.mrf.mxu0
    %v376 = vadd.f32 0.0, %v375
    %377 = vmatmul.f32.gmra.mxu0 %v170
    %v378 = vpop.f32.mrf.mxu0
    %v379 = vadd.f32 0.0, %v378
    %380 = vmatmul.f32.gmra.mxu0 %v173
    %v381 = vpop.f32.mrf.mxu0
    %v382 = vadd.f32 0.0, %v381
    %383 = vmatmul.f32.gmra.mxu0 %v176
    %v384 = vpop.f32.mrf.mxu0
    %v385 = vadd.f32 0.0, %v384
    %386 = vmatmul.f32.gmra.mxu0 %v179
    %v387 = vpop.f32.mrf.mxu0
    %v388 = vadd.f32 0.0, %v387
    %389 = vmatmul.f32.gmra.mxu0 %v182
    %v390 = vpop.f32.mrf.mxu0
    %v391 = vadd.f32 0.0, %v390
    %392 = vmatmul.f32.gmra.mxu0 %v185
    %v393 = vpop.f32.mrf.mxu0
    %v394 = vadd.f32 0.0, %v393
    %395 = vmatmul.f32.gmra.mxu0 %v188
    %v396 = vpop.f32.mrf.mxu0
    %v397 = vadd.f32 0.0, %v396
    %398 = vmatmul.f32.gmra.mxu0 %v191
    %v399 = vpop.f32.mrf.mxu0
    %v400 = vadd.f32 0.0, %v399
    %401 = vmatmul.f32.gmra.mxu0 %v194
    %v402 = vpop.f32.mrf.mxu0
    %v403 = vadd.f32 0.0, %v402
    %404 = vmatmul.f32.gmra.mxu0 %v197
    %v405 = vpop.f32.mrf.mxu0
    %v406 = vadd.f32 0.0, %v405
    %407 = vmatmul.f32.gmra.mxu0 %v200
    %v408 = vpop.f32.mrf.mxu0
    %v409 = vadd.f32 0.0, %v408
    %410 = vmatmul.f32.gmra.mxu0 %v203
    %v411 = vpop.f32.mrf.mxu0
    %v412 = vadd.f32 0.0, %v411
    %413 = vmatmul.f32.gmra.mxu0 %v206
    %v414 = vpop.f32.mrf.mxu0
    %v415 = vadd.f32 0.0, %v414
    %416 = vmatmul.f32.gmra.mxu0 %v209
    %v417 = vpop.f32.mrf.mxu0
    %v418 = vadd.f32 0.0, %v417
    %419 = vmatmul.f32.gmra.mxu0 %v212
    %v420 = vpop.f32.mrf.mxu0
    %v421 = vadd.f32 0.0, %v420
    %422 = vmatmul.f32.gmra.mxu0 %v215
    %v423 = vpop.f32.mrf.mxu0
    %v424 = vadd.f32 0.0, %v423
    %425 = vmatmul.f32.gmra.mxu0 %v218
    %v426 = vpop.f32.mrf.mxu0
    %v427 = vadd.f32 0.0, %v426
    %428 = vmatmul.f32.gmra.mxu0 %v221
    %v429 = vpop.f32.mrf.mxu0
    %v430 = vadd.f32 0.0, %v429
    %431 = vmatmul.f32.gmra.mxu0 %v224
    %v432 = vpop.f32.mrf.mxu0
    %v433 = vadd.f32 0.0, %v432
    %434 = vmatmul.f32.gmra.mxu0 %v227
    %v435 = vpop.f32.mrf.mxu0
    %v436 = vadd.f32 0.0, %v435
    %437 = vmatmul.f32.gmra.mxu0 %v230
    %v438 = vpop.f32.mrf.mxu0
    %v439 = vadd.f32 0.0, %v438
    %440 = vmatmul.f32.gmra.mxu0 %v233
    %v441 = vpop.f32.mrf.mxu0
    %v442 = vadd.f32 0.0, %v441
    %443 = vmatmul.f32.gmra.mxu0 %v236
    %v444 = vpop.f32.mrf.mxu0
    %v445 = vadd.f32 0.0, %v444
    %446 = vmatmul.f32.gmra.mxu0 %v239
    %v447 = vpop.f32.mrf.mxu0
    %v448 = vadd.f32 0.0, %v447
    %449 = vmatmul.f32.gmra.mxu0 %v242
    %v450 = vpop.f32.mrf.mxu0
    %v451 = vadd.f32 0.0, %v450
    %452 = vmatmul.f32.gmra.mxu0 %v245
    %v453 = vpop.f32.mrf.mxu0
    %v454 = vadd.f32 0.0, %v453
    %455 = vmatmul.f32.gmra.mxu0 %v248
    %v456 = vpop.f32.mrf.mxu0
    %v457 = vadd.f32 0.0, %v456
    %458 = vmatmul.f32.gmra.mxu0 %v251
    %v459 = vpop.f32.mrf.mxu0
    %v460 = vadd.f32 0.0, %v459
    %461 = vmatmul.f32.gmra.mxu0 %v254
    %v462 = vpop.f32.mrf.mxu0
    %v463 = vadd.f32 0.0, %v462
    %464 = vmatmul.f32.gmra.mxu0 %v257
    %v465 = vpop.f32.mrf.mxu0
    %v466 = vadd.f32 0.0, %v465
    %467 = vmatmul.f32.gmra.mxu0 %v260
    %v468 = vpop.f32.mrf.mxu0
    %v469 = vadd.f32 0.0, %v468
    %470 = vmatmul.f32.gmra.mxu0 %v263
    %v471 = vpop.f32.mrf.mxu0
    %v472 = vadd.f32 0.0, %v471
    %473 = vmatmul.f32.gmra.mxu0 %v266
    %v474 = vpop.f32.mrf.mxu0
    %v475 = vadd.f32 0.0, %v474
    %476 = vmatmul.f32.gmra.mxu0 %v269
    %v477 = vpop.f32.mrf.mxu0
    %v478 = vadd.f32 0.0, %v477
    %479 = vdwg.mxu0
    %v480 = vpack.c.bf16 %v289, %v289
    %v481 = vpack.c.bf16 %v292, %v292
    %v482 = vpack.c.bf16 %v295, %v295
    %v483 = vpack.c.bf16 %v298, %v298
    %v484 = vpack.c.bf16 %v301, %v301
    %v485 = vpack.c.bf16 %v304, %v304
    %v486 = vpack.c.bf16 %v307, %v307
    %v487 = vpack.c.bf16 %v310, %v310
    %v488 = vpack.c.bf16 %v313, %v313
    %v489 = vpack.c.bf16 %v316, %v316
    %v490 = vpack.c.bf16 %v319, %v319
    %v491 = vpack.c.bf16 %v322, %v322
    %v492 = vpack.c.bf16 %v325, %v325
    %v493 = vpack.c.bf16 %v328, %v328
    %v494 = vpack.c.bf16 %v331, %v331
    %v495 = vpack.c.bf16 %v334, %v334
    %v496 = vpack.c.bf16 %v337, %v337
    %v497 = vpack.c.bf16 %v340, %v340
    %v498 = vpack.c.bf16 %v343, %v343
    %v499 = vpack.c.bf16 %v346, %v346
    %v500 = vpack.c.bf16 %v349, %v349
    %v501 = vpack.c.bf16 %v352, %v352
    %v502 = vpack.c.bf16 %v355, %v355
    %v503 = vpack.c.bf16 %v358, %v358
    %v504 = vpack.c.bf16 %v361, %v361
    %v505 = vpack.c.bf16 %v364, %v364
    %v506 = vpack.c.bf16 %v367, %v367
    %v507 = vpack.c.bf16 %v370, %v370
    %v508 = vpack.c.bf16 %v373, %v373
    %v509 = vpack.c.bf16 %v376, %v376
    %v510 = vpack.c.bf16 %v379, %v379
    %v511 = vpack.c.bf16 %v382, %v382
    %v512 = vpack.c.bf16 %v385, %v385
    %v513 = vpack.c.bf16 %v388, %v388
    %v514 = vpack.c.bf16 %v391, %v391
    %v515 = vpack.c.bf16 %v394, %v394
    %v516 = vpack.c.bf16 %v397, %v397
    %v517 = vpack.c.bf16 %v400, %v400
    %v518 = vpack.c.bf16 %v403, %v403
    %v519 = vpack.c.bf16 %v406, %v406
    %v520 = vpack.c.bf16 %v409, %v409
    %v521 = vpack.c.bf16 %v412, %v412
    %v522 = vpack.c.bf16 %v415, %v415
    %v523 = vpack.c.bf16 %v418, %v418
    %v524 = vpack.c.bf16 %v421, %v421
    %v525 = vpack.c.bf16 %v424, %v424
    %v526 = vpack.c.bf16 %v427, %v427
    %v527 = vpack.c.bf16 %v430, %v430
    %v528 = vpack.c.bf16 %v433, %v433
    %v529 = vpack.c.bf16 %v436, %v436
    %v530 = vpack.c.bf16 %v439, %v439
    %v531 = vpack.c.bf16 %v442, %v442
    %v532 = vpack.c.bf16 %v445, %v445
    %v533 = vpack.c.bf16 %v448, %v448
    %v534 = vpack.c.bf16 %v451, %v451
    %v535 = vpack.c.bf16 %v454, %v454
    %v536 = vpack.c.bf16 %v457, %v457
    %v537 = vpack.c.bf16 %v460, %v460
    %v538 = vpack.c.bf16 %v463, %v463
    %v539 = vpack.c.bf16 %v466, %v466
    %v540 = vpack.c.bf16 %v469, %v469
    %v541 = vpack.c.bf16 %v472, %v472
    %v542 = vpack.c.bf16 %v475, %v475
    %v543 = vpack.c.bf16 %v478, %v478
    %544 = vst [vmem:[#allocation2] sm:$0xf] %v480
    %545 = vst [vmem:[#allocation2 + $0x4] sm:$0xf] %v481
    %546 = vst [vmem:[#allocation2 + $0x8] sm:$0xf] %v482
    %547 = vst [vmem:[#allocation2 + $0xc] sm:$0xf] %v483
    %548 = vst [vmem:[#allocation2 + $0x10] sm:$0xf] %v484
    %549 = vst [vmem:[#allocation2 + $0x14] sm:$0xf] %v485
    %550 = vst [vmem:[#allocation2 + $0x18] sm:$0xf] %v486
    %551 = vst [vmem:[#allocation2 + $0x1c] sm:$0xf] %v487
    %552 = vst [vmem:[#allocation2 + $0x20] sm:$0xf] %v488
    %553 = vst [vmem:[#allocation2 + $0x24] sm:$0xf] %v489
    %554 = vst [vmem:[#allocation2 + $0x28] sm:$0xf] %v490
    %555 = vst [vmem:[#allocation2 + $0x2c] sm:$0xf] %v491
    %556 = vst [vmem:[#allocation2 + $0x30] sm:$0xf] %v492
    %557 = vst [vmem:[#allocation2 + $0x34] sm:$0xf] %v493
    %558 = vst [vmem:[#allocation2 + $0x38] sm:$0xf] %v494
    %559 = vst [vmem:[#allocation2 + $0x3c] sm:$0xf] %v495
    %560 = vst [vmem:[#allocation2 + $0x40] sm:$0xf] %v496
    %561 = vst [vmem:[#allocation2 + $0x44] sm:$0xf] %v497
    %562 = vst [vmem:[#allocation2 + $0x48] sm:$0xf] %v498
    %563 = vst [vmem:[#allocation2 + $0x4c] sm:$0xf] %v499
    %564 = vst [vmem:[#allocation2 + $0x50] sm:$0xf] %v500
    %565 = vst [vmem:[#allocation2 + $0x54] sm:$0xf] %v501
    %566 = vst [vmem:[#allocation2 + $0x58] sm:$0xf] %v502
    %567 = vst [vmem:[#allocation2 + $0x5c] sm:$0xf] %v503
    %568 = vst [vmem:[#allocation2 + $0x60] sm:$0xf] %v504
    %569 = vst [vmem:[#allocation2 + $0x64] sm:$0xf] %v505
    %570 = vst [vmem:[#allocation2 + $0x68] sm:$0xf] %v506
    %571 = vst [vmem:[#allocation2 + $0x6c] sm:$0xf] %v507
    %572 = vst [vmem:[#allocation2 + $0x70] sm:$0xf] %v508
    %573 = vst [vmem:[#allocation2 + $0x74] sm:$0xf] %v509
    %574 = vst [vmem:[#allocation2 + $0x78] sm:$0xf] %v510
    %575 = vst [vmem:[#allocation2 + $0x7c] sm:$0xf] %v511
    %576 = vst [vmem:[#allocation2 + $0x80] sm:$0xf] %v512
    %577 = vst [vmem:[#allocation2 + $0x84] sm:$0xf] %v513
    %578 = vst [vmem:[#allocation2 + $0x88] sm:$0xf] %v514
    %579 = vst [vmem:[#allocation2 + $0x8c] sm:$0xf] %v515
    %580 = vst [vmem:[#allocation2 + $0x90] sm:$0xf] %v516
    %581 = vst [vmem:[#allocation2 + $0x94] sm:$0xf] %v517
    %582 = vst [vmem:[#allocation2 + $0x98] sm:$0xf] %v518
    %583 = vst [vmem:[#allocation2 + $0x9c] sm:$0xf] %v519
    %584 = vst [vmem:[#allocation2 + $0xa0] sm:$0xf] %v520
    %585 = vst [vmem:[#allocation2 + $0xa4] sm:$0xf] %v521
    %586 = vst [vmem:[#allocation2 + $0xa8] sm:$0xf] %v522
    %587 = vst [vmem:[#allocation2 + $0xac] sm:$0xf] %v523
    %588 = vst [vmem:[#allocation2 + $0xb0] sm:$0xf] %v524
    %589 = vst [vmem:[#allocation2 + $0xb4] sm:$0xf] %v525
    %590 = vst [vmem:[#allocation2 + $0xb8] sm:$0xf] %v526
    %591 = vst [vmem:[#allocation2 + $0xbc] sm:$0xf] %v527
    %592 = vst [vmem:[#allocation2 + $0xc0] sm:$0xf] %v528
    %593 = vst [vmem:[#allocation2 + $0xc4] sm:$0xf] %v529
    %594 = vst [vmem:[#allocation2 + $0xc8] sm:$0xf] %v530
    %595 = vst [vmem:[#allocation2 + $0xcc] sm:$0xf] %v531
    %596 = vst [vmem:[#allocation2 + $0xd0] sm:$0xf] %v532
    %597 = vst [vmem:[#allocation2 + $0xd4] sm:$0xf] %v533
    %598 = vst [vmem:[#allocation2 + $0xd8] sm:$0xf] %v534
    %599 = vst [vmem:[#allocation2 + $0xdc] sm:$0xf] %v535
    %600 = vst [vmem:[#allocation2 + $0xe0] sm:$0xf] %v536
    %601 = vst [vmem:[#allocation2 + $0xe4] sm:$0xf] %v537
    %602 = vst [vmem:[#allocation2 + $0xe8] sm:$0xf] %v538
    %603 = vst [vmem:[#allocation2 + $0xec] sm:$0xf] %v539
    %604 = vst [vmem:[#allocation2 + $0xf0] sm:$0xf] %v540
    %605 = vst [vmem:[#allocation2 + $0xf4] sm:$0xf] %v541
    %606 = vst [vmem:[#allocation2 + $0xf8] sm:$0xf] %v542
    %607 = vst [vmem:[#allocation2 + $0xfc] sm:$0xf] %v543
    // Predicated region
    $region10: #{tpu_custom_call.1} parent=1 // pred_check
      _
    $region11: #{tpu_custom_call.1} parent=1 // pred_check_branch
      %609 = sbr.rel (0) target = $region13
    $region12: #{tpu_custom_call.1} parent=1 // pred_region
      %611 = vsyncadd [#allocation3], 0
      %s612 = sshll.u32 [#allocation2], 4
      %s613 = int_to_ptr.vmem [resolvable:$true] %s612
      %s614 = sshll.u32 %s2, 4
      %s615 = int_to_ptr.hbm [resolvable:$true] %s614
      %620 = dma.vmem_to_hbm [thread:$0]  %s613, 4096, %s615, [#allocation3], 64, 64, 4
    $region13: #{tpu_custom_call.1} parent=1 // pred_fallthru
      _
    // Predicated region
    $region14: #{tpu_custom_call.1} parent=1 // pred_check
      _
    $region15: #{tpu_custom_call.1} parent=1 // pred_check_branch
      %622 = sbr.rel (0) target = $region17
    $region16: #{tpu_custom_call.1} parent=1 // pred_region
      %624 = dma.done [#allocation3], 4096
    $region17: #{tpu_custom_call.1} parent=1 // pred_fallthru
      _
    %625 = vsyncpa [#allocation3], 1

</llo_original>
